<compile_context>
chip_gen: v7x
topology: tpu7x:2x2x1
jax: 0.10.0
libtpu: 0.0.40
codegen_flags: <defaults>
</compile_context>

<pallas_src>
import functools

import jax
import jax.numpy as jnp
from jax.experimental import pallas as pl
from jax.experimental.pallas import tpu as pltpu

INPUT_SIZE = 5
HIDDEN_SIZE = 30
OUTPUT_SIZE = 1

# Packed parameter slab layout: (N_ROWS, HPAD) f32, every block 8-row aligned.
HPAD = 128                      # H=30 and O=1 padded to one full lane tile
ROW_WIH = 0                     # rows [0, I)          : W_ih^T  (I, H)
ROW_WHH = 8                     # rows [8, 8+HPAD)     : W_hh^T  (H, H) zero-padded
ROW_BIAS = ROW_WHH + HPAD       # row 136              : b_ih + b_hh
ROW_BFC = ROW_BIAS + 1          # row 137              : b_fc (lane 0)
ROW_WFC = ROW_BIAS + 8          # rows [144, 144+HPAD) : W_fc^T  (H, O) zero-padded
N_ROWS = ROW_WFC + HPAD         # 272 rows * 128 lanes * 4 B = 136 KiB (fits VMEM easily)


def rnn_fc_kernel(x_ref, p_ref, out_ref, *, seq_len, batch, input_size):
    # x_ref:   (B, T, I) f32     p_ref: (N_ROWS, HPAD) f32 packed params
    # out_ref: (B, O)    f32
    f32 = jnp.float32
    bf16 = jnp.bfloat16

    # One-time (off the serial chain) views / casts of the packed parameter slab.
    wih = p_ref[ROW_WIH:ROW_WIH + input_size, :].astype(bf16)   # (I, HPAD)
    whh = p_ref[ROW_WHH:ROW_WHH + HPAD, :].astype(bf16)         # (HPAD, HPAD)
    wfc = p_ref[ROW_WFC:ROW_WFC + HPAD, :].astype(bf16)         # (HPAD, HPAD)
    bias = p_ref[ROW_BIAS:ROW_BIAS + 1, :]                      # (1, HPAD) f32
    bfc = p_ref[ROW_BFC:ROW_BFC + 1, :]                         # (1, HPAD) f32

    # Hoisted input projection for ALL timesteps as one matmul (+ summed RNN
    # bias), off the recurrence's dependent chain.  The reshapes only merge /
    # split the leading (B, T) dims — tile-layout preserving, one-time, ~KiB.
    x2 = x_ref[...].reshape(batch * seq_len, input_size).astype(bf16)
    pre = jnp.dot(x2, wih, preferred_element_type=f32) + bias   # (B*T, HPAD)
    pre = pre.reshape(batch, seq_len, HPAD)                     # (B, T, HPAD)

    # Fully unrolled recurrence: the ONLY serial work per step is one single-pass
    # bf16 MXU matmul (f32 accumulate), one vector add and one EUP tanh.
    h = jnp.zeros((batch, HPAD), f32)
    for t in range(seq_len):
        rec = jnp.dot(h.astype(bf16), whh, preferred_element_type=f32)
        h = jnp.tanh(pre[:, t, :] + rec)

    # Linear head on the last hidden state; the real result lives in lane 0 (O=1).
    out = jnp.dot(h.astype(bf16), wfc, preferred_element_type=f32) + bfc  # (B, HPAD)
    out_ref[...] = out[:, : out_ref.shape[1]]


def init_params(key, input_size, hidden_size, output_size):
    """PyTorch-layout params with nn.RNN / nn.Linear style uniform(-1/sqrt(H), 1/sqrt(H))."""
    ks = jax.random.split(key, 6)
    bound = 1.0 / jnp.sqrt(hidden_size)
    u = lambda k, shape: jax.random.uniform(k, shape, jnp.float32, -bound, bound)
    return {
        "w_ih": u(ks[0], (hidden_size, input_size)),
        "w_hh": u(ks[1], (hidden_size, hidden_size)),
        "b_ih": u(ks[2], (1, hidden_size)),
        "b_hh": u(ks[3], (1, hidden_size)),
        "w_fc": u(ks[4], (output_size, hidden_size)),
        "b_fc": u(ks[5], (1, output_size)),
    }


def prepare_params(params):
    """ONE-TIME packing (at init, NOT per forward call): transpose weights, sum the
    two RNN biases, pad H->128 / O->128 lanes, and concatenate everything into a
    single (272, 128) f32 slab.  The forward pass then has exactly one parameter
    DMA and zero wrapper-side XLA ops."""
    w_ih, w_hh = params["w_ih"], params["w_hh"]
    w_fc, b_fc = params["w_fc"], params["b_fc"]
    H = w_hh.shape[0]
    I = w_ih.shape[1]
    O = w_fc.shape[0]
    p = jnp.zeros((N_ROWS, HPAD), jnp.float32)
    p = p.at[ROW_WIH:ROW_WIH + I, :H].set(w_ih.T)
    p = p.at[ROW_WHH:ROW_WHH + H, :H].set(w_hh.T)
    p = p.at[ROW_BIAS, :H].set((params["b_ih"] + params["b_hh"]).reshape(H))
    p = p.at[ROW_BFC, :O].set(b_fc.reshape(O))
    p = p.at[ROW_WFC:ROW_WFC + H, :O].set(w_fc.T)
    return p


@jax.jit
def rnn_model_forward(x, packed_params):
    """x: (B, T, I) f32 batch-first (PyTorch layout).  Returns (B, O) f32."""
    B, T, I = x.shape
    vmem = pl.BlockSpec(memory_space=pltpu.MemorySpace.VMEM)
    kernel = functools.partial(rnn_fc_kernel, seq_len=T, batch=B, input_size=I)
    return pl.pallas_call(
        kernel,
        out_shape=jax.ShapeDtypeStruct((B, OUTPUT_SIZE), jnp.float32),
        in_specs=[vmem, vmem],
        out_specs=vmem,
    )(x, packed_params)


def reference_forward(x, params, *, bf16_matmuls):
    """Pure-JAX reference.  bf16_matmuls=True mirrors the kernel's bf16-operand /
    f32-accumulate MXU dots; False is a full-f32 (Precision.HIGHEST) reference."""
    if bf16_matmuls:
        dot = lambda a, b: jnp.dot(a.astype(jnp.bfloat16), b.astype(jnp.bfloat16),
                                   preferred_element_type=jnp.float32)
    else:
        dot = lambda a, b: jnp.dot(a, b, precision=jax.lax.Precision.HIGHEST,
                                   preferred_element_type=jnp.float32)
    B, T, _ = x.shape
    H = params["w_hh"].shape[0]
    wih_t, whh_t, wfc_t = params["w_ih"].T, params["w_hh"].T, params["w_fc"].T
    bias = params["b_ih"] + params["b_hh"]
    h = jnp.zeros((B, H), jnp.float32)
    for t in range(T):
        h = jnp.tanh(dot(x[:, t, :], wih_t) + bias + dot(h, whh_t))
    return dot(h, wfc_t) + params["b_fc"]


if __name__ == "__main__":
    key = jax.random.PRNGKey(0)
    k_param, k_x = jax.random.split(key)

    batch, seq_len = 2, 8
    params = init_params(k_param, INPUT_SIZE, HIDDEN_SIZE, OUTPUT_SIZE)
    packed = jax.block_until_ready(prepare_params(params))  # one-time, off the hot path
    x = jax.random.normal(k_x, (batch, seq_len, INPUT_SIZE), jnp.float32)

    out = jax.block_until_ready(rnn_model_forward(x, packed))
    assert out.shape == (batch, OUTPUT_SIZE)

    # Tight check vs a reference using the same bf16-operand / f32-accumulate dots.
    ref_bf16 = reference_forward(x, params, bf16_matmuls=True)
    assert jnp.allclose(out, ref_bf16, atol=5e-3, rtol=5e-3), (out, ref_bf16)

    # Sanity check vs full-f32 math (tolerance loosened because the recurrent
    # matmuls run as single-pass bf16 on the MXU, as flagged in the perf review).
    ref_f32 = reference_forward(x, params, bf16_matmuls=False)
    assert jnp.allclose(out, ref_f32, atol=1e-1, rtol=1e-1), (out, ref_f32)

    print("KERNEL_OK")
</pallas_src>

<mosaic_0001>
module attributes {stable_mosaic.version = 11 : i64} {
  func.func @rnn_fc_kernel(%arg0: memref<2x8x5xf32, #tpu.memory_space<vmem>>, %arg1: memref<272x128xf32, #tpu.memory_space<vmem>>, %arg2: memref<2x1xf32, #tpu.memory_space<vmem>>) attributes {dimension_semantics = [], scalar_prefetch = 0 : i64, scratch_operands = 0 : i64, tpu.core_type = #tpu.core_type<tc>} {
    %c0 = arith.constant 0 : index
    %c0_0 = arith.constant 0 : index
    %0 = vector.load %arg1[%c0, %c0_0] : memref<272x128xf32, #tpu.memory_space<vmem>>, vector<5x128xf32>
    %1 = arith.truncf %0 : vector<5x128xf32> to vector<5x128xbf16>
    %c8 = arith.constant 8 : index
    %c0_1 = arith.constant 0 : index
    %2 = vector.load %arg1[%c8, %c0_1] : memref<272x128xf32, #tpu.memory_space<vmem>>, vector<128x128xf32>
    %3 = arith.truncf %2 : vector<128x128xf32> to vector<128x128xbf16>
    %c144 = arith.constant 144 : index
    %c0_2 = arith.constant 0 : index
    %4 = vector.load %arg1[%c144, %c0_2] : memref<272x128xf32, #tpu.memory_space<vmem>>, vector<128x128xf32>
    %5 = arith.truncf %4 : vector<128x128xf32> to vector<128x128xbf16>
    %c136 = arith.constant 136 : index
    %c0_3 = arith.constant 0 : index
    %6 = vector.load %arg1[%c136, %c0_3] : memref<272x128xf32, #tpu.memory_space<vmem>>, vector<1x128xf32>
    %c137 = arith.constant 137 : index
    %c0_4 = arith.constant 0 : index
    %7 = vector.load %arg1[%c137, %c0_4] : memref<272x128xf32, #tpu.memory_space<vmem>>, vector<1x128xf32>
    %c0_5 = arith.constant 0 : index
    %c0_6 = arith.constant 0 : index
    %c0_7 = arith.constant 0 : index
    %8 = vector.load %arg0[%c0_5, %c0_6, %c0_7] : memref<2x8x5xf32, #tpu.memory_space<vmem>>, vector<2x8x5xf32>
    %9 = vector.shape_cast %8 : vector<2x8x5xf32> to vector<16x5xf32>
    %10 = arith.truncf %9 : vector<16x5xf32> to vector<16x5xbf16>
    %cst = arith.constant dense<0.000000e+00> : vector<16x128xf32>
    %11 = tpu.matmul %10, %1, %cst {dimension_numbers = #tpu.dot_dimension_numbers<[1], [0], [0], [1], [0, 0, 1, 1], [], []>} : vector<16x5xbf16>, vector<5x128xbf16>, vector<16x128xf32> -> vector<16x128xf32>
    %12 = vector.broadcast %6 : vector<1x128xf32> to vector<16x128xf32>
    %13 = arith.addf %11, %12 : vector<16x128xf32>
    %14 = vector.shape_cast %13 : vector<16x128xf32> to vector<2x8x128xf32>
    %cst_8 = arith.constant 0.000000e+00 : f32
    %15 = vector.broadcast %cst_8 : f32 to vector<2x128xf32>
    %16 = arith.truncf %15 : vector<2x128xf32> to vector<2x128xbf16>
    %cst_9 = arith.constant dense<0.000000e+00> : vector<2x128xf32>
    %17 = tpu.matmul %16, %3, %cst_9 {dimension_numbers = #tpu.dot_dimension_numbers<[1], [0], [0], [1], [0, 0, 1, 1], [], []>} : vector<2x128xbf16>, vector<128x128xbf16>, vector<2x128xf32> -> vector<2x128xf32>
    %18 = vector.extract_strided_slice %14 {offsets = [0, 0, 0], sizes = [2, 1, 128], strides = [1, 1, 1]} : vector<2x8x128xf32> to vector<2x1x128xf32>
    %19 = vector.shape_cast %18 : vector<2x1x128xf32> to vector<2x128xf32>
    %20 = arith.addf %19, %17 : vector<2x128xf32>
    %21 = math.tanh %20 : vector<2x128xf32>
    %22 = arith.truncf %21 : vector<2x128xf32> to vector<2x128xbf16>
    %cst_10 = arith.constant dense<0.000000e+00> : vector<2x128xf32>
    %23 = tpu.matmul %22, %3, %cst_10 {dimension_numbers = #tpu.dot_dimension_numbers<[1], [0], [0], [1], [0, 0, 1, 1], [], []>} : vector<2x128xbf16>, vector<128x128xbf16>, vector<2x128xf32> -> vector<2x128xf32>
    %24 = vector.extract_strided_slice %14 {offsets = [0, 1, 0], sizes = [2, 1, 128], strides = [1, 1, 1]} : vector<2x8x128xf32> to vector<2x1x128xf32>
    %25 = vector.shape_cast %24 : vector<2x1x128xf32> to vector<2x128xf32>
    %26 = arith.addf %25, %23 : vector<2x128xf32>
    %27 = math.tanh %26 : vector<2x128xf32>
    %28 = arith.truncf %27 : vector<2x128xf32> to vector<2x128xbf16>
    %cst_11 = arith.constant dense<0.000000e+00> : vector<2x128xf32>
    %29 = tpu.matmul %28, %3, %cst_11 {dimension_numbers = #tpu.dot_dimension_numbers<[1], [0], [0], [1], [0, 0, 1, 1], [], []>} : vector<2x128xbf16>, vector<128x128xbf16>, vector<2x128xf32> -> vector<2x128xf32>
    %30 = vector.extract_strided_slice %14 {offsets = [0, 2, 0], sizes = [2, 1, 128], strides = [1, 1, 1]} : vector<2x8x128xf32> to vector<2x1x128xf32>
    %31 = vector.shape_cast %30 : vector<2x1x128xf32> to vector<2x128xf32>
    %32 = arith.addf %31, %29 : vector<2x128xf32>
    %33 = math.tanh %32 : vector<2x128xf32>
    %34 = arith.truncf %33 : vector<2x128xf32> to vector<2x128xbf16>
    %cst_12 = arith.constant dense<0.000000e+00> : vector<2x128xf32>
    %35 = tpu.matmul %34, %3, %cst_12 {dimension_numbers = #tpu.dot_dimension_numbers<[1], [0], [0], [1], [0, 0, 1, 1], [], []>} : vector<2x128xbf16>, vector<128x128xbf16>, vector<2x128xf32> -> vector<2x128xf32>
    %36 = vector.extract_strided_slice %14 {offsets = [0, 3, 0], sizes = [2, 1, 128], strides = [1, 1, 1]} : vector<2x8x128xf32> to vector<2x1x128xf32>
    %37 = vector.shape_cast %36 : vector<2x1x128xf32> to vector<2x128xf32>
    %38 = arith.addf %37, %35 : vector<2x128xf32>
    %39 = math.tanh %38 : vector<2x128xf32>
    %40 = arith.truncf %39 : vector<2x128xf32> to vector<2x128xbf16>
    %cst_13 = arith.constant dense<0.000000e+00> : vector<2x128xf32>
    %41 = tpu.matmul %40, %3, %cst_13 {dimension_numbers = #tpu.dot_dimension_numbers<[1], [0], [0], [1], [0, 0, 1, 1], [], []>} : vector<2x128xbf16>, vector<128x128xbf16>, vector<2x128xf32> -> vector<2x128xf32>
    %42 = vector.extract_strided_slice %14 {offsets = [0, 4, 0], sizes = [2, 1, 128], strides = [1, 1, 1]} : vector<2x8x128xf32> to vector<2x1x128xf32>
    %43 = vector.shape_cast %42 : vector<2x1x128xf32> to vector<2x128xf32>
    %44 = arith.addf %43, %41 : vector<2x128xf32>
    %45 = math.tanh %44 : vector<2x128xf32>
    %46 = arith.truncf %45 : vector<2x128xf32> to vector<2x128xbf16>
    %cst_14 = arith.constant dense<0.000000e+00> : vector<2x128xf32>
    %47 = tpu.matmul %46, %3, %cst_14 {dimension_numbers = #tpu.dot_dimension_numbers<[1], [0], [0], [1], [0, 0, 1, 1], [], []>} : vector<2x128xbf16>, vector<128x128xbf16>, vector<2x128xf32> -> vector<2x128xf32>
    %48 = vector.extract_strided_slice %14 {offsets = [0, 5, 0], sizes = [2, 1, 128], strides = [1, 1, 1]} : vector<2x8x128xf32> to vector<2x1x128xf32>
    %49 = vector.shape_cast %48 : vector<2x1x128xf32> to vector<2x128xf32>
    %50 = arith.addf %49, %47 : vector<2x128xf32>
    %51 = math.tanh %50 : vector<2x128xf32>
    %52 = arith.truncf %51 : vector<2x128xf32> to vector<2x128xbf16>
    %cst_15 = arith.constant dense<0.000000e+00> : vector<2x128xf32>
    %53 = tpu.matmul %52, %3, %cst_15 {dimension_numbers = #tpu.dot_dimension_numbers<[1], [0], [0], [1], [0, 0, 1, 1], [], []>} : vector<2x128xbf16>, vector<128x128xbf16>, vector<2x128xf32> -> vector<2x128xf32>
    %54 = vector.extract_strided_slice %14 {offsets = [0, 6, 0], sizes = [2, 1, 128], strides = [1, 1, 1]} : vector<2x8x128xf32> to vector<2x1x128xf32>
    %55 = vector.shape_cast %54 : vector<2x1x128xf32> to vector<2x128xf32>
    %56 = arith.addf %55, %53 : vector<2x128xf32>
    %57 = math.tanh %56 : vector<2x128xf32>
    %58 = arith.truncf %57 : vector<2x128xf32> to vector<2x128xbf16>
    %cst_16 = arith.constant dense<0.000000e+00> : vector<2x128xf32>
    %59 = tpu.matmul %58, %3, %cst_16 {dimension_numbers = #tpu.dot_dimension_numbers<[1], [0], [0], [1], [0, 0, 1, 1], [], []>} : vector<2x128xbf16>, vector<128x128xbf16>, vector<2x128xf32> -> vector<2x128xf32>
    %60 = vector.extract_strided_slice %14 {offsets = [0, 7, 0], sizes = [2, 1, 128], strides = [1, 1, 1]} : vector<2x8x128xf32> to vector<2x1x128xf32>
    %61 = vector.shape_cast %60 : vector<2x1x128xf32> to vector<2x128xf32>
    %62 = arith.addf %61, %59 : vector<2x128xf32>
    %63 = math.tanh %62 : vector<2x128xf32>
    %64 = arith.truncf %63 : vector<2x128xf32> to vector<2x128xbf16>
    %cst_17 = arith.constant dense<0.000000e+00> : vector<2x128xf32>
    %65 = tpu.matmul %64, %5, %cst_17 {dimension_numbers = #tpu.dot_dimension_numbers<[1], [0], [0], [1], [0, 0, 1, 1], [], []>} : vector<2x128xbf16>, vector<128x128xbf16>, vector<2x128xf32> -> vector<2x128xf32>
    %66 = vector.broadcast %7 : vector<1x128xf32> to vector<2x128xf32>
    %67 = arith.addf %65, %66 : vector<2x128xf32>
    %68 = vector.extract_strided_slice %67 {offsets = [0, 0], sizes = [2, 1], strides = [1, 1]} : vector<2x128xf32> to vector<2x1xf32>
    %c0_18 = arith.constant 0 : index
    %c0_19 = arith.constant 0 : index
    %69 = vector.load %arg2[%c0_18, %c0_19] : memref<2x1xf32, #tpu.memory_space<vmem>>, vector<2x1xf32>
    tpu.vector_store %arg2[%c0_18, %c0_19], %68 {strides = array<i32>} : memref<2x1xf32, #tpu.memory_space<vmem>>, vector<2x1xf32>,
    return
  }
}

</mosaic_0001>

<llo_original>
// kernel: rnn_model_forward.1
$region0: #{rnn_model_forward.1}
  #allocation0 [shape = 'u32[]', space=smem, size = 0x4, offset = 0x4, fixed_abs, tag = 'smem constant byte address 0x4 - core index']
  #allocation1 [shape = 'u32[144,128]{1,0:T(1,128)}', space=vmem, size = 0x12000, scoped, tag = 'internal scratch']
  %s0 = inlined_call_operand.vmem [shape: f32[2,8,5], index: 0, kind: input, shape index: {}]
  %s1 = inlined_call_operand.hbm [shape: f32[272,128], index: 1, kind: input, shape index: {}]
  %s2 = inlined_call_operand.vmem [shape: f32[2,1], index: 2, kind: output, shape index: {}]
  %s3 = sld [smem:[#allocation0]]
  $region22: #{rnn_model_forward.1} parent=0
    _
  %s5 = ssub.s32 1, %s3
  %s6 = scalar_select 0, %s5, %s3
  $region1: #{rnn_model_forward.1} parent=0
    #allocation2 [shape = 'u8[139264]{0}', space=vmem, size = 0x22000, scoped, tag = 'input window, operand 1, single buffered']
    #allocation3 [shape = 's32[1]{0}', space=sflag, size = 0x4, scoped, tag = 'scoped memory for rnn_model_forward.1']
    %7 = vsyncpa [#allocation3], 0
    // Predicated region
    $region2: #{rnn_model_forward.1} parent=1 // pred_check
      _
    $region3: #{rnn_model_forward.1} parent=1 // pred_check_branch
      %9 = sbr.rel (0) target = $region5
    $region4: #{rnn_model_forward.1} parent=1 // pred_region
      _
    $region5: #{rnn_model_forward.1} parent=1 // pred_fallthru
      _
    // Predicated region
    $region6: #{rnn_model_forward.1} parent=1 // pred_check
      _
    $region7: #{rnn_model_forward.1} parent=1 // pred_check_branch
      %11 = sbr.rel (0) target = $region9
    $region8: #{rnn_model_forward.1} parent=1 // pred_region
      %s13 = ssub.s32 4352, 4352
      %14 = vsyncadd [#allocation3], %s13
      %s15 = sshll.u32 [#allocation2], 4
      %s16 = int_to_ptr.vmem [resolvable:$true] %s15
      %21 = dma.hbm_to_vmem [thread:$0]  %s1, 4352, %s16, [#allocation3], 128, 128, 8
    $region9: #{rnn_model_forward.1} parent=1 // pred_fallthru
      _
    // Predicated region
    $region10: #{rnn_model_forward.1} parent=1 // pred_check
      _
    $region11: #{rnn_model_forward.1} parent=1 // pred_check_branch
      %23 = sbr.rel (0) target = $region13
    $region12: #{rnn_model_forward.1} parent=1 // pred_region
      %24 = dma.done [#allocation3], 4352
    $region13: #{rnn_model_forward.1} parent=1 // pred_fallthru
      _
    %v26 = vld [vmem:[#allocation2] sm:$0x1f]
    %v27 = vpack.c.bf16 %v26, %v26
    %v28 = vld [vmem:[#allocation2 + $0x8] sm:$0xff]
    %v29 = vld [vmem:[#allocation2 + $0x10] sm:$0xff]
    %v30 = vld [vmem:[#allocation2 + $0x18] sm:$0xff]
    %v31 = vld [vmem:[#allocation2 + $0x20] sm:$0xff]
    %v32 = vld [vmem:[#allocation2 + $0x28] sm:$0xff]
    %v33 = vld [vmem:[#allocation2 + $0x30] sm:$0xff]
    %v34 = vld [vmem:[#allocation2 + $0x38] sm:$0xff]
    %v35 = vld [vmem:[#allocation2 + $0x40] sm:$0xff]
    %v36 = vld [vmem:[#allocation2 + $0x48] sm:$0xff]
    %v37 = vld [vmem:[#allocation2 + $0x50] sm:$0xff]
    %v38 = vld [vmem:[#allocation2 + $0x58] sm:$0xff]
    %v39 = vld [vmem:[#allocation2 + $0x60] sm:$0xff]
    %v40 = vld [vmem:[#allocation2 + $0x68] sm:$0xff]
    %v41 = vld [vmem:[#allocation2 + $0x70] sm:$0xff]
    %v42 = vld [vmem:[#allocation2 + $0x78] sm:$0xff]
    %v43 = vld [vmem:[#allocation2 + $0x80] sm:$0xff]
    %v44 = vpack.c.bf16 %v29, %v28
    %v45 = vpack.c.bf16 %v31, %v30
    %v46 = vpack.c.bf16 %v33, %v32
    %v47 = vpack.c.bf16 %v35, %v34
    %v48 = vpack.c.bf16 %v37, %v36
    %v49 = vpack.c.bf16 %v39, %v38
    %v50 = vpack.c.bf16 %v41, %v40
    %v51 = vpack.c.bf16 %v43, %v42
    %v52 = vld [vmem:[#allocation2 + $0x90] sm:$0xff]
    %v53 = vld [vmem:[#allocation2 + $0x98] sm:$0xff]
    %v54 = vld [vmem:[#allocation2 + $0xa0] sm:$0xff]
    %v55 = vld [vmem:[#allocation2 + $0xa8] sm:$0xff]
    %v56 = vld [vmem:[#allocation2 + $0xb0] sm:$0xff]
    %v57 = vld [vmem:[#allocation2 + $0xb8] sm:$0xff]
    %v58 = vld [vmem:[#allocation2 + $0xc0] sm:$0xff]
    %v59 = vld [vmem:[#allocation2 + $0xc8] sm:$0xff]
    %v60 = vld [vmem:[#allocation2 + $0xd0] sm:$0xff]
    %v61 = vld [vmem:[#allocation2 + $0xd8] sm:$0xff]
    %v62 = vld [vmem:[#allocation2 + $0xe0] sm:$0xff]
    %v63 = vld [vmem:[#allocation2 + $0xe8] sm:$0xff]
    %v64 = vld [vmem:[#allocation2 + $0xf0] sm:$0xff]
    %v65 = vld [vmem:[#allocation2 + $0xf8] sm:$0xff]
    %v66 = vld [vmem:[#allocation2 + $0x100] sm:$0xff]
    %v67 = vld [vmem:[#allocation2 + $0x108] sm:$0xff]
    %v68 = vpack.c.bf16 %v53, %v52
    %v69 = vpack.c.bf16 %v55, %v54
    %v70 = vpack.c.bf16 %v57, %v56
    %v71 = vpack.c.bf16 %v59, %v58
    %v72 = vpack.c.bf16 %v61, %v60
    %v73 = vpack.c.bf16 %v63, %v62
    %v74 = vpack.c.bf16 %v65, %v64
    %v75 = vpack.c.bf16 %v67, %v66
    %v76 = vld [vmem:[#allocation2 + $0x88] sm:$0x1]
    %v77 = vld [vmem:[#allocation2 + $0x89] sm:$0x1]
    %v78 = vld [vmem:[%s0] sm:$0xff]
    %v79 = vld [vmem:[%s0 + $0x8] sm:$0xff]
    %v80 = vpack.c.bf16 %v79, %v78
    %v81 = vlaneseq
    %v82 = vshrl.u32 %v81, 7
    %v83 = vsub.s32 0, %v82
    %v84 = vrot.slane %v76, %v83
    %vm85 = vcmask 39936
    %v87 = vsel %vm85, %v80, 0
    %vm89 = vcmask 1041408
    %vm90 = vcmask 1042432
    %v91 = vsel %vm89, 4294967295, 65535
    %v92 = vsel %vm90, %v91, 0
    %v94 = vand.u32 %v27, %v92
    %96 = vmatprep.subr.bf16.mxu0 0
    %97 = vmatpush1.bf16.msra.mxu0 %v94
    %98 = vmatprep.subr.bf16.mxu0 0
    %99 = vmatpush1.bf16.msra.mxu0 0
    %100 = vmatprep.subr.bf16.mxu0 0
    %101 = vmatpush1.bf16.msra.mxu0 0
    %102 = vmatprep.subr.bf16.mxu0 0
    %103 = vmatpush1.bf16.msra.mxu0 0
    %104 = vmatprep.subr.bf16.mxu0 0
    %105 = vmatpush1.bf16.msra.mxu0 0
    %106 = vmatprep.subr.bf16.mxu0 0
    %107 = vmatpush1.bf16.msra.mxu0 0
    %108 = vmatprep.subr.bf16.mxu0 0
    %109 = vmatpush1.bf16.msra.mxu0 0
    %110 = vmatprep.subr.bf16.mxu0 0
    %111 = vmatpush1.bf16.msra.mxu0 0
    %112 = vmatprep.subr.bf16.mxu0 0
    %113 = vmatpush1.bf16.msra.mxu0 0
    %114 = vmatprep.subr.bf16.mxu0 0
    %115 = vmatpush1.bf16.msra.mxu0 0
    %116 = vmatprep.subr.bf16.mxu0 0
    %117 = vmatpush1.bf16.msra.mxu0 0
    %118 = vmatprep.subr.bf16.mxu0 0
    %119 = vmatpush1.bf16.msra.mxu0 0
    %120 = vmatprep.subr.bf16.mxu0 0
    %121 = vmatpush1.bf16.msra.mxu0 0
    %122 = vmatprep.subr.bf16.mxu0 0
    %123 = vmatpush1.bf16.msra.mxu0 0
    %124 = vmatprep.subr.bf16.mxu0 0
    %125 = vmatpush1.bf16.msra.mxu0 0
    %126 = vmatprep.subr.bf16.mxu0 0
    %127 = vmatpush1.bf16.msra.mxu0 0
    %128 = vmatprep.mubr.bf16.mxu0 0
    %129 = vmatmul.mubr.bf16.gmra.mrb[0].mxu0 %v87
    %v130 = vpop.f32.mrb[0].mxu0
    %v131 = vadd.f32 %v84, %v130
    %v132 = vpop.f32.mrb[0].mxu0
    %v133 = vpop.f32.mrb[0].mxu0
    %v134 = vadd.f32 %v84, %v133
    %v135 = vpop.f32.mrb[0].mxu0
    %136 = vdwg.mxu0
    %137 = vmatprep.subr.bf16.mxu0 0
    %138 = vmatpush1.bf16.msra.mxu0 %v44
    %139 = vmatprep.subr.bf16.mxu0 0
    %140 = vmatpush1.bf16.msra.mxu0 %v45
    %141 = vmatprep.subr.bf16.mxu0 0
    %142 = vmatpush1.bf16.msra.mxu0 %v46
    %143 = vmatprep.subr.bf16.mxu0 0
    %144 = vmatpush1.bf16.msra.mxu0 %v47
    %145 = vmatprep.subr.bf16.mxu0 0
    %146 = vmatpush1.bf16.msra.mxu0 %v48
    %147 = vmatprep.subr.bf16.mxu0 0
    %148 = vmatpush1.bf16.msra.mxu0 %v49
    %149 = vmatprep.subr.bf16.mxu0 0
    %150 = vmatpush1.bf16.msra.mxu0 %v50
    %151 = vmatprep.subr.bf16.mxu0 0
    %152 = vmatpush1.bf16.msra.mxu0 %v51
    %153 = vmatprep.subr.bf16.mxu0 0
    %154 = vmatpush1.bf16.msra.mxu0 0
    %155 = vmatprep.subr.bf16.mxu0 0
    %156 = vmatpush1.bf16.msra.mxu0 0
    %157 = vmatprep.subr.bf16.mxu0 0
    %158 = vmatpush1.bf16.msra.mxu0 0
    %159 = vmatprep.subr.bf16.mxu0 0
    %160 = vmatpush1.bf16.msra.mxu0 0
    %161 = vmatprep.subr.bf16.mxu0 0
    %162 = vmatpush1.bf16.msra.mxu0 0
    %163 = vmatprep.subr.bf16.mxu0 0
    %164 = vmatpush1.bf16.msra.mxu0 0
    %165 = vmatprep.subr.bf16.mxu0 0
    %166 = vmatpush1.bf16.msra.mxu0 0
    %167 = vmatprep.subr.bf16.mxu0 0
    %168 = vmatpush1.bf16.msra.mxu0 0
    %169 = vmatprep.mubr.bf16.mxu0 0
    %170 = vmatmul.mubr.bf16.gmra.mrb[0].mxu0 0
    %v171 = vpop.f32.mrb[0].mxu0
    %v172 = vadd.f32 0.0, %v171
    %v173 = vpop.f32.mrb[0].mxu0
    %v174 = vpop.f32.mrb[0].mxu0
    %v175 = vpop.f32.mrb[0].mxu0
    %176 = vdwg.mxu0
    %v178 = vrot.slane %v172, 1
    %v181 = vadd.f32 %v131, %v172
    %v182 = vadd.f32 %v134, %v178
    %v183 = vtanh.pop %v181
    %v184 = vtanh.pop %v182
    %v185 = vpack.c.bf16 %v183, %v183
    %v186 = vpack.c.bf16 %v184, %v184
    %v189 = vunpack.c.l.b16 %v185
    %v190 = vunpack.c.l.b16 %v186
    %v191 = vrot.slane %v190, 7
    %vm192 = vcmask 1041409
    %v193 = vsel %vm192, %v191, %v189
    %v194 = vpack.c.b16 %v193, %v193
    %196 = vmatprep.subr.bf16.mxu0 0
    %197 = vmatpush1.bf16.msra.mxu0 %v44
    %198 = vmatprep.subr.bf16.mxu0 0
    %199 = vmatpush1.bf16.msra.mxu0 %v45
    %200 = vmatprep.subr.bf16.mxu0 0
    %201 = vmatpush1.bf16.msra.mxu0 %v46
    %202 = vmatprep.subr.bf16.mxu0 0
    %203 = vmatpush1.bf16.msra.mxu0 %v47
    %204 = vmatprep.subr.bf16.mxu0 0
    %205 = vmatpush1.bf16.msra.mxu0 %v48
    %206 = vmatprep.subr.bf16.mxu0 0
    %207 = vmatpush1.bf16.msra.mxu0 %v49
    %208 = vmatprep.subr.bf16.mxu0 0
    %209 = vmatpush1.bf16.msra.mxu0 %v50
    %210 = vmatprep.subr.bf16.mxu0 0
    %211 = vmatpush1.bf16.msra.mxu0 %v51
    %212 = vmatprep.subr.bf16.mxu0 0
    %213 = vmatpush1.bf16.msra.mxu0 0
    %214 = vmatprep.subr.bf16.mxu0 0
    %215 = vmatpush1.bf16.msra.mxu0 0
    %216 = vmatprep.subr.bf16.mxu0 0
    %217 = vmatpush1.bf16.msra.mxu0 0
    %218 = vmatprep.subr.bf16.mxu0 0
    %219 = vmatpush1.bf16.msra.mxu0 0
    %220 = vmatprep.subr.bf16.mxu0 0
    %221 = vmatpush1.bf16.msra.mxu0 0
    %222 = vmatprep.subr.bf16.mxu0 0
    %223 = vmatpush1.bf16.msra.mxu0 0
    %224 = vmatprep.subr.bf16.mxu0 0
    %225 = vmatpush1.bf16.msra.mxu0 0
    %226 = vmatprep.subr.bf16.mxu0 0
    %227 = vmatpush1.bf16.msra.mxu0 0
    %228 = vmatprep.mubr.bf16.mxu0 0
    %229 = vmatmul.mubr.bf16.gmra.mrb[0].mxu0 %v194
    %v230 = vpop.f32.mrb[0].mxu0
    %v231 = vadd.f32 0.0, %v230
    %v232 = vpop.f32.mrb[0].mxu0
    %v233 = vpop.f32.mrb[0].mxu0
    %v234 = vpop.f32.mrb[0].mxu0
    %235 = vdwg.mxu0
    %v237 = vrot.slane %v231, 7
    %v240 = vadd.f32 %v131, %v237
    %v241 = vadd.f32 %v134, %v231
    %v242 = vtanh.pop %v240
    %v243 = vtanh.pop %v241
    %v244 = vpack.c.bf16 %v242, %v242
    %v245 = vpack.c.bf16 %v243, %v243
    %v248 = vunpack.c.l.b16 %v244
    %v249 = vunpack.c.l.b16 %v245
    %v250 = vrot.slane %v248, 1
    %v251 = vsel %vm192, %v249, %v250
    %v252 = vpack.c.b16 %v251, %v251
    %254 = vmatprep.subr.bf16.mxu0 0
    %255 = vmatpush1.bf16.msra.mxu0 %v44
    %256 = vmatprep.subr.bf16.mxu0 0
    %257 = vmatpush1.bf16.msra.mxu0 %v45
    %258 = vmatprep.subr.bf16.mxu0 0
    %259 = vmatpush1.bf16.msra.mxu0 %v46
    %260 = vmatprep.subr.bf16.mxu0 0
    %261 = vmatpush1.bf16.msra.mxu0 %v47
    %262 = vmatprep.subr.bf16.mxu0 0
    %263 = vmatpush1.bf16.msra.mxu0 %v48
    %264 = vmatprep.subr.bf16.mxu0 0
    %265 = vmatpush1.bf16.msra.mxu0 %v49
    %266 = vmatprep.subr.bf16.mxu0 0
    %267 = vmatpush1.bf16.msra.mxu0 %v50
    %268 = vmatprep.subr.bf16.mxu0 0
    %269 = vmatpush1.bf16.msra.mxu0 %v51
    %270 = vmatprep.subr.bf16.mxu0 0
    %271 = vmatpush1.bf16.msra.mxu0 0
    %272 = vmatprep.subr.bf16.mxu0 0
    %273 = vmatpush1.bf16.msra.mxu0 0
    %274 = vmatprep.subr.bf16.mxu0 0
    %275 = vmatpush1.bf16.msra.mxu0 0
    %276 = vmatprep.subr.bf16.mxu0 0
    %277 = vmatpush1.bf16.msra.mxu0 0
    %278 = vmatprep.subr.bf16.mxu0 0
    %279 = vmatpush1.bf16.msra.mxu0 0
    %280 = vmatprep.subr.bf16.mxu0 0
    %281 = vmatpush1.bf16.msra.mxu0 0
    %282 = vmatprep.subr.bf16.mxu0 0
    %283 = vmatpush1.bf16.msra.mxu0 0
    %284 = vmatprep.subr.bf16.mxu0 0
    %285 = vmatpush1.bf16.msra.mxu0 0
    %286 = vmatprep.mubr.bf16.mxu0 0
    %287 = vmatmul.mubr.bf16.gmra.mrb[0].mxu0 %v252
    %v288 = vpop.f32.mrb[0].mxu0
    %v289 = vadd.f32 0.0, %v288
    %v290 = vpop.f32.mrb[0].mxu0
    %v291 = vpop.f32.mrb[0].mxu0
    %v292 = vpop.f32.mrb[0].mxu0
    %293 = vdwg.mxu0
    %v295 = vrot.slane %v289, 6
    %v296 = vrot.slane %v289, 7
    %v299 = vadd.f32 %v131, %v295
    %v300 = vadd.f32 %v134, %v296
    %v301 = vtanh.pop %v299
    %v302 = vtanh.pop %v300
    %v303 = vpack.c.bf16 %v301, %v301
    %v304 = vpack.c.bf16 %v302, %v302
    %v307 = vunpack.c.l.b16 %v303
    %v308 = vunpack.c.l.b16 %v304
    %v309 = vrot.slane %v307, 2
    %v310 = vrot.slane %v308, 1
    %v311 = vsel %vm192, %v310, %v309
    %v312 = vpack.c.b16 %v311, %v311
    %314 = vmatprep.subr.bf16.mxu0 0
    %315 = vmatpush1.bf16.msra.mxu0 %v44
    %316 = vmatprep.subr.bf16.mxu0 0
    %317 = vmatpush1.bf16.msra.mxu0 %v45
    %318 = vmatprep.subr.bf16.mxu0 0
    %319 = vmatpush1.bf16.msra.mxu0 %v46
    %320 = vmatprep.subr.bf16.mxu0 0
    %321 = vmatpush1.bf16.msra.mxu0 %v47
    %322 = vmatprep.subr.bf16.mxu0 0
    %323 = vmatpush1.bf16.msra.mxu0 %v48
    %324 = vmatprep.subr.bf16.mxu0 0
    %325 = vmatpush1.bf16.msra.mxu0 %v49
    %326 = vmatprep.subr.bf16.mxu0 0
    %327 = vmatpush1.bf16.msra.mxu0 %v50
    %328 = vmatprep.subr.bf16.mxu0 0
    %329 = vmatpush1.bf16.msra.mxu0 %v51
    %330 = vmatprep.subr.bf16.mxu0 0
    %331 = vmatpush1.bf16.msra.mxu0 0
    %332 = vmatprep.subr.bf16.mxu0 0
    %333 = vmatpush1.bf16.msra.mxu0 0
    %334 = vmatprep.subr.bf16.mxu0 0
    %335 = vmatpush1.bf16.msra.mxu0 0
    %336 = vmatprep.subr.bf16.mxu0 0
    %337 = vmatpush1.bf16.msra.mxu0 0
    %338 = vmatprep.subr.bf16.mxu0 0
    %339 = vmatpush1.bf16.msra.mxu0 0
    %340 = vmatprep.subr.bf16.mxu0 0
    %341 = vmatpush1.bf16.msra.mxu0 0
    %342 = vmatprep.subr.bf16.mxu0 0
    %343 = vmatpush1.bf16.msra.mxu0 0
    %344 = vmatprep.subr.bf16.mxu0 0
    %345 = vmatpush1.bf16.msra.mxu0 0
    %346 = vmatprep.mubr.bf16.mxu0 0
    %347 = vmatmul.mubr.bf16.gmra.mrb[0].mxu0 %v312
    %v348 = vpop.f32.mrb[0].mxu0
    %v349 = vadd.f32 0.0, %v348
    %v350 = vpop.f32.mrb[0].mxu0
    %v351 = vpop.f32.mrb[0].mxu0
    %v352 = vpop.f32.mrb[0].mxu0
    %353 = vdwg.mxu0
    %v355 = vrot.slane %v349, 5
    %v356 = vrot.slane %v349, 6
    %v359 = vadd.f32 %v131, %v355
    %v360 = vadd.f32 %v134, %v356
    %v361 = vtanh.pop %v359
    %v362 = vtanh.pop %v360
    %v363 = vpack.c.bf16 %v361, %v361
    %v364 = vpack.c.bf16 %v362, %v362
    %v367 = vunpack.c.l.b16 %v363
    %v368 = vunpack.c.l.b16 %v364
    %v369 = vrot.slane %v367, 3
    %v370 = vrot.slane %v368, 2
    %v371 = vsel %vm192, %v370, %v369
    %v372 = vpack.c.b16 %v371, %v371
    %374 = vmatprep.subr.bf16.mxu0 0
    %375 = vmatpush1.bf16.msra.mxu0 %v44
    %376 = vmatprep.subr.bf16.mxu0 0
    %377 = vmatpush1.bf16.msra.mxu0 %v45
    %378 = vmatprep.subr.bf16.mxu0 0
    %379 = vmatpush1.bf16.msra.mxu0 %v46
    %380 = vmatprep.subr.bf16.mxu0 0
    %381 = vmatpush1.bf16.msra.mxu0 %v47
    %382 = vmatprep.subr.bf16.mxu0 0
    %383 = vmatpush1.bf16.msra.mxu0 %v48
    %384 = vmatprep.subr.bf16.mxu0 0
    %385 = vmatpush1.bf16.msra.mxu0 %v49
    %386 = vmatprep.subr.bf16.mxu0 0
    %387 = vmatpush1.bf16.msra.mxu0 %v50
    %388 = vmatprep.subr.bf16.mxu0 0
    %389 = vmatpush1.bf16.msra.mxu0 %v51
    %390 = vmatprep.subr.bf16.mxu0 0
    %391 = vmatpush1.bf16.msra.mxu0 0
    %392 = vmatprep.subr.bf16.mxu0 0
    %393 = vmatpush1.bf16.msra.mxu0 0
    %394 = vmatprep.subr.bf16.mxu0 0
    %395 = vmatpush1.bf16.msra.mxu0 0
    %396 = vmatprep.subr.bf16.mxu0 0
    %397 = vmatpush1.bf16.msra.mxu0 0
    %398 = vmatprep.subr.bf16.mxu0 0
    %399 = vmatpush1.bf16.msra.mxu0 0
    %400 = vmatprep.subr.bf16.mxu0 0
    %401 = vmatpush1.bf16.msra.mxu0 0
    %402 = vmatprep.subr.bf16.mxu0 0
    %403 = vmatpush1.bf16.msra.mxu0 0
    %404 = vmatprep.subr.bf16.mxu0 0
    %405 = vmatpush1.bf16.msra.mxu0 0
    %406 = vmatprep.mubr.bf16.mxu0 0
    %407 = vmatmul.mubr.bf16.gmra.mrb[0].mxu0 %v372
    %v408 = vpop.f32.mrb[0].mxu0
    %v409 = vadd.f32 0.0, %v408
    %v410 = vpop.f32.mrb[0].mxu0
    %v411 = vpop.f32.mrb[0].mxu0
    %v412 = vpop.f32.mrb[0].mxu0
    %413 = vdwg.mxu0
    %v415 = vrot.slane %v409, 4
    %v416 = vrot.slane %v409, 5
    %v419 = vadd.f32 %v131, %v415
    %v420 = vadd.f32 %v134, %v416
    %v421 = vtanh.pop %v419
    %v422 = vtanh.pop %v420
    %v423 = vpack.c.bf16 %v421, %v421
    %v424 = vpack.c.bf16 %v422, %v422
    %v427 = vunpack.c.l.b16 %v423
    %v428 = vunpack.c.l.b16 %v424
    %v429 = vrot.slane %v427, 4
    %v430 = vrot.slane %v428, 3
    %v431 = vsel %vm192, %v430, %v429
    %v432 = vpack.c.b16 %v431, %v431
    %434 = vmatprep.subr.bf16.mxu0 0
    %435 = vmatpush1.bf16.msra.mxu0 %v44
    %436 = vmatprep.subr.bf16.mxu0 0
    %437 = vmatpush1.bf16.msra.mxu0 %v45
    %438 = vmatprep.subr.bf16.mxu0 0
    %439 = vmatpush1.bf16.msra.mxu0 %v46
    %440 = vmatprep.subr.bf16.mxu0 0
    %441 = vmatpush1.bf16.msra.mxu0 %v47
    %442 = vmatprep.subr.bf16.mxu0 0
    %443 = vmatpush1.bf16.msra.mxu0 %v48
    %444 = vmatprep.subr.bf16.mxu0 0
    %445 = vmatpush1.bf16.msra.mxu0 %v49
    %446 = vmatprep.subr.bf16.mxu0 0
    %447 = vmatpush1.bf16.msra.mxu0 %v50
    %448 = vmatprep.subr.bf16.mxu0 0
    %449 = vmatpush1.bf16.msra.mxu0 %v51
    %450 = vmatprep.subr.bf16.mxu0 0
    %451 = vmatpush1.bf16.msra.mxu0 0
    %452 = vmatprep.subr.bf16.mxu0 0
    %453 = vmatpush1.bf16.msra.mxu0 0
    %454 = vmatprep.subr.bf16.mxu0 0
    %455 = vmatpush1.bf16.msra.mxu0 0
    %456 = vmatprep.subr.bf16.mxu0 0
    %457 = vmatpush1.bf16.msra.mxu0 0
    %458 = vmatprep.subr.bf16.mxu0 0
    %459 = vmatpush1.bf16.msra.mxu0 0
    %460 = vmatprep.subr.bf16.mxu0 0
    %461 = vmatpush1.bf16.msra.mxu0 0
    %462 = vmatprep.subr.bf16.mxu0 0
    %463 = vmatpush1.bf16.msra.mxu0 0
    %464 = vmatprep.subr.bf16.mxu0 0
    %465 = vmatpush1.bf16.msra.mxu0 0
    %466 = vmatprep.mubr.bf16.mxu0 0
    %467 = vmatmul.mubr.bf16.gmra.mrb[0].mxu0 %v432
    %v468 = vpop.f32.mrb[0].mxu0
    %v469 = vadd.f32 0.0, %v468
    %v470 = vpop.f32.mrb[0].mxu0
    %v471 = vpop.f32.mrb[0].mxu0
    %v472 = vpop.f32.mrb[0].mxu0
    %473 = vdwg.mxu0
    %v475 = vrot.slane %v469, 3
    %v476 = vrot.slane %v469, 4
    %v479 = vadd.f32 %v131, %v475
    %v480 = vadd.f32 %v134, %v476
    %v481 = vtanh.pop %v479
    %v482 = vtanh.pop %v480
    %v483 = vpack.c.bf16 %v481, %v481
    %v484 = vpack.c.bf16 %v482, %v482
    %v487 = vunpack.c.l.b16 %v483
    %v488 = vunpack.c.l.b16 %v484
    %v489 = vrot.slane %v487, 5
    %v490 = vrot.slane %v488, 4
    %v491 = vsel %vm192, %v490, %v489
    %v492 = vpack.c.b16 %v491, %v491
    %494 = vmatprep.subr.bf16.mxu0 0
    %495 = vmatpush1.bf16.msra.mxu0 %v44
    %496 = vmatprep.subr.bf16.mxu0 0
    %497 = vmatpush1.bf16.msra.mxu0 %v45
    %498 = vmatprep.subr.bf16.mxu0 0
    %499 = vmatpush1.bf16.msra.mxu0 %v46
    %500 = vmatprep.subr.bf16.mxu0 0
    %501 = vmatpush1.bf16.msra.mxu0 %v47
    %502 = vmatprep.subr.bf16.mxu0 0
    %503 = vmatpush1.bf16.msra.mxu0 %v48
    %504 = vmatprep.subr.bf16.mxu0 0
    %505 = vmatpush1.bf16.msra.mxu0 %v49
    %506 = vmatprep.subr.bf16.mxu0 0
    %507 = vmatpush1.bf16.msra.mxu0 %v50
    %508 = vmatprep.subr.bf16.mxu0 0
    %509 = vmatpush1.bf16.msra.mxu0 %v51
    %510 = vmatprep.subr.bf16.mxu0 0
    %511 = vmatpush1.bf16.msra.mxu0 0
    %512 = vmatprep.subr.bf16.mxu0 0
    %513 = vmatpush1.bf16.msra.mxu0 0
    %514 = vmatprep.subr.bf16.mxu0 0
    %515 = vmatpush1.bf16.msra.mxu0 0
    %516 = vmatprep.subr.bf16.mxu0 0
    %517 = vmatpush1.bf16.msra.mxu0 0
    %518 = vmatprep.subr.bf16.mxu0 0
    %519 = vmatpush1.bf16.msra.mxu0 0
    %520 = vmatprep.subr.bf16.mxu0 0
    %521 = vmatpush1.bf16.msra.mxu0 0
    %522 = vmatprep.subr.bf16.mxu0 0
    %523 = vmatpush1.bf16.msra.mxu0 0
    %524 = vmatprep.subr.bf16.mxu0 0
    %525 = vmatpush1.bf16.msra.mxu0 0
    %526 = vmatprep.mubr.bf16.mxu0 0
    %527 = vmatmul.mubr.bf16.gmra.mrb[0].mxu0 %v492
    %v528 = vpop.f32.mrb[0].mxu0
    %v529 = vadd.f32 0.0, %v528
    %v530 = vpop.f32.mrb[0].mxu0
    %v531 = vpop.f32.mrb[0].mxu0
    %v532 = vpop.f32.mrb[0].mxu0
    %533 = vdwg.mxu0
    %v535 = vrot.slane %v529, 2
    %v536 = vrot.slane %v529, 3
    %v539 = vadd.f32 %v131, %v535
    %v540 = vadd.f32 %v134, %v536
    %v541 = vtanh.pop %v539
    %v542 = vtanh.pop %v540
    %v543 = vpack.c.bf16 %v541, %v541
    %v544 = vpack.c.bf16 %v542, %v542
    %v547 = vunpack.c.l.b16 %v543
    %v548 = vunpack.c.l.b16 %v544
    %v549 = vrot.slane %v547, 6
    %v550 = vrot.slane %v548, 5
    %v551 = vsel %vm192, %v550, %v549
    %v552 = vpack.c.b16 %v551, %v551
    %554 = vmatprep.subr.bf16.mxu0 0
    %555 = vmatpush1.bf16.msra.mxu0 %v44
    %556 = vmatprep.subr.bf16.mxu0 0
    %557 = vmatpush1.bf16.msra.mxu0 %v45
    %558 = vmatprep.subr.bf16.mxu0 0
    %559 = vmatpush1.bf16.msra.mxu0 %v46
    %560 = vmatprep.subr.bf16.mxu0 0
    %561 = vmatpush1.bf16.msra.mxu0 %v47
    %562 = vmatprep.subr.bf16.mxu0 0
    %563 = vmatpush1.bf16.msra.mxu0 %v48
    %564 = vmatprep.subr.bf16.mxu0 0
    %565 = vmatpush1.bf16.msra.mxu0 %v49
    %566 = vmatprep.subr.bf16.mxu0 0
    %567 = vmatpush1.bf16.msra.mxu0 %v50
    %568 = vmatprep.subr.bf16.mxu0 0
    %569 = vmatpush1.bf16.msra.mxu0 %v51
    %570 = vmatprep.subr.bf16.mxu0 0
    %571 = vmatpush1.bf16.msra.mxu0 0
    %572 = vmatprep.subr.bf16.mxu0 0
    %573 = vmatpush1.bf16.msra.mxu0 0
    %574 = vmatprep.subr.bf16.mxu0 0
    %575 = vmatpush1.bf16.msra.mxu0 0
    %576 = vmatprep.subr.bf16.mxu0 0
    %577 = vmatpush1.bf16.msra.mxu0 0
    %578 = vmatprep.subr.bf16.mxu0 0
    %579 = vmatpush1.bf16.msra.mxu0 0
    %580 = vmatprep.subr.bf16.mxu0 0
    %581 = vmatpush1.bf16.msra.mxu0 0
    %582 = vmatprep.subr.bf16.mxu0 0
    %583 = vmatpush1.bf16.msra.mxu0 0
    %584 = vmatprep.subr.bf16.mxu0 0
    %585 = vmatpush1.bf16.msra.mxu0 0
    %586 = vmatprep.mubr.bf16.mxu0 0
    %587 = vmatmul.mubr.bf16.gmra.mrb[0].mxu0 %v552
    %v588 = vpop.f32.mrb[0].mxu0
    %v589 = vadd.f32 0.0, %v588
    %v590 = vpop.f32.mrb[0].mxu0
    %v591 = vpop.f32.mrb[0].mxu0
    %v592 = vpop.f32.mrb[0].mxu0
    %593 = vdwg.mxu0
    %v595 = vrot.slane %v589, 1
    %v596 = vrot.slane %v589, 2
    %v599 = vadd.f32 %v131, %v595
    %v600 = vadd.f32 %v134, %v596
    %v601 = vtanh.pop %v599
    %v602 = vtanh.pop %v600
    %v603 = vpack.c.bf16 %v601, %v601
    %v604 = vpack.c.bf16 %v602, %v602
    %v605 = vlaneseq
    %v606 = vshrl.u32 %v605, 7
    %v607 = vsub.s32 0, %v606
    %v608 = vrot.slane %v77, %v607
    %v611 = vunpack.c.l.b16 %v603
    %v612 = vunpack.c.l.b16 %v604
    %v613 = vrot.slane %v611, 7
    %v614 = vrot.slane %v612, 6
    %v615 = vsel %vm192, %v614, %v613
    %v616 = vpack.c.b16 %v615, %v615
    %618 = vmatprep.subr.bf16.mxu0 0
    %619 = vmatpush1.bf16.msra.mxu0 %v68
    %620 = vmatprep.subr.bf16.mxu0 0
    %621 = vmatpush1.bf16.msra.mxu0 %v69
    %622 = vmatprep.subr.bf16.mxu0 0
    %623 = vmatpush1.bf16.msra.mxu0 %v70
    %624 = vmatprep.subr.bf16.mxu0 0
    %625 = vmatpush1.bf16.msra.mxu0 %v71
    %626 = vmatprep.subr.bf16.mxu0 0
    %627 = vmatpush1.bf16.msra.mxu0 %v72
    %628 = vmatprep.subr.bf16.mxu0 0
    %629 = vmatpush1.bf16.msra.mxu0 %v73
    %630 = vmatprep.subr.bf16.mxu0 0
    %631 = vmatpush1.bf16.msra.mxu0 %v74
    %632 = vmatprep.subr.bf16.mxu0 0
    %633 = vmatpush1.bf16.msra.mxu0 %v75
    %634 = vmatprep.subr.bf16.mxu0 0
    %635 = vmatpush1.bf16.msra.mxu0 0
    %636 = vmatprep.subr.bf16.mxu0 0
    %637 = vmatpush1.bf16.msra.mxu0 0
    %638 = vmatprep.subr.bf16.mxu0 0
    %639 = vmatpush1.bf16.msra.mxu0 0
    %640 = vmatprep.subr.bf16.mxu0 0
    %641 = vmatpush1.bf16.msra.mxu0 0
    %642 = vmatprep.subr.bf16.mxu0 0
    %643 = vmatpush1.bf16.msra.mxu0 0
    %644 = vmatprep.subr.bf16.mxu0 0
    %645 = vmatpush1.bf16.msra.mxu0 0
    %646 = vmatprep.subr.bf16.mxu0 0
    %647 = vmatpush1.bf16.msra.mxu0 0
    %648 = vmatprep.subr.bf16.mxu0 0
    %649 = vmatpush1.bf16.msra.mxu0 0
    %650 = vmatprep.mubr.bf16.mxu0 0
    %651 = vmatmul.mubr.bf16.gmra.mrb[0].mxu0 %v616
    %v652 = vpop.f32.mrb[0].mxu0
    %v653 = vadd.f32 %v608, %v652
    %v654 = vpop.f32.mrb[0].mxu0
    %v655 = vpop.f32.mrb[0].mxu0
    %v656 = vpop.f32.mrb[0].mxu0
    %657 = vdwg.mxu0
    %vm658 = vcmask 1024
    %659 = vst.msk [vmem:[%s2] sm:$0x3] %vm658, %v653
    // Predicated region
    $region14: #{rnn_model_forward.1} parent=1 // pred_check
      _
    $region15: #{rnn_model_forward.1} parent=1 // pred_check_branch
      %661 = sbr.rel (0) target = $region17
    $region16: #{rnn_model_forward.1} parent=1 // pred_region
      _
    $region17: #{rnn_model_forward.1} parent=1 // pred_fallthru
      _
    // Predicated region
    $region18: #{rnn_model_forward.1} parent=1 // pred_check
      _
    $region19: #{rnn_model_forward.1} parent=1 // pred_check_branch
      %663 = sbr.rel (0) target = $region21
    $region20: #{rnn_model_forward.1} parent=1 // pred_region
      _
    $region21: #{rnn_model_forward.1} parent=1 // pred_fallthru
      _
    %664 = vsyncpa [#allocation3], 1

</llo_original>
